<compile_context>
chip_gen: v7x
topology: tpu7x:2x2x1
jax: 0.10.0
libtpu: 0.0.40
codegen_flags: <defaults>
</compile_context>

<pallas_src>
import jax
import jax.numpy as jnp
from jax.experimental import pallas as pl
from jax.experimental.pallas import tpu as pltpu

_LANE = 128             # vreg lane width
_SUBLANE = 8            # vreg sublane rows
_MAX_BLOCK_ROWS = 4096  # rows of 128 lanes per grid step


def _dice_bce_kernel(p_ref, t_ref, bce_ref, inter_ref, psum_ref, tsum_ref):
    """Accumulate per-lane partial sums of [bce, p*t, p, t] over the reduction
    (inner) grid axis.  Output blocks stay VMEM-resident across that axis."""

    @pl.when(pl.program_id(1) == 0)
    def _():
        bce_ref[...] = jnp.zeros_like(bce_ref)
        inter_ref[...] = jnp.zeros_like(inter_ref)
        psum_ref[...] = jnp.zeros_like(psum_ref)
        tsum_ref[...] = jnp.zeros_like(tsum_ref)

    p = p_ref[...]                              # (block_rows, 128) f32 in [0, 1]
    t = t_ref[...].astype(jnp.float32)          # int8 {0, 1} -> f32 (0 on padding)

    # t is exactly 0 or 1, so one log per element suffices.  The -100 clamp
    # matches torch F.binary_cross_entropy; zero-padded elements give
    # log(1 - 0) = 0, contributing exactly 0.
    bce_terms = -jnp.maximum(jnp.log(jnp.where(t > 0.5, p, 1.0 - p)), -100.0)

    def fold(x):
        # (block_rows, 128) -> (block_rows//8, 8, 128); reducing axis 0 is just
        # VPU adds across vregs (no cross-lane / sublane shuffle per step).
        return jnp.sum(x.reshape(-1, _SUBLANE, _LANE), axis=0)[None]

    bce_ref[...] += fold(bce_terms)
    inter_ref[...] += fold(p * t)
    psum_ref[...] += fold(p)
    tsum_ref[...] += fold(t)


def _round_up(x, m):
    return pl.cdiv(x, m) * m


def dice_bce_loss(prediction, target, bce_weight=0.5):
    """prediction: (N, 2, H, W) float probabilities; target: (N, H, W) int labels."""
    n, c, h, w = prediction.shape
    assert c == 2, "DiceBCELoss one-hot is hard-coded to 2 classes"

    # NCHW one-hot built directly (no NHWC one_hot + transpose); int8 stream.
    lbl = target.astype(jnp.int8)                        # (N, H, W)
    t_onehot = jnp.stack([1 - lbl, lbl], axis=1)         # (N, 2, H, W) int8

    p_flat = prediction.astype(jnp.float32).reshape(-1)
    t_flat = t_onehot.reshape(-1)
    total = p_flat.shape[0]

    rows_needed = pl.cdiv(total, _LANE)
    block_rows = min(_MAX_BLOCK_ROWS, _round_up(rows_needed, _SUBLANE))
    # Pad so rows split into 2 equal halves of whole blocks (axis 0 of the grid
    # feeds the two TensorCores on v7x; it is a plain outer loop elsewhere).
    padded_rows = _round_up(rows_needed, 2 * block_rows)
    pad = padded_rows * _LANE - total
    p_flat = jnp.pad(p_flat, (0, pad))    # pad with 0.0 -> zero contribution
    t_flat = jnp.pad(t_flat, (0, pad))    # pad with 0   -> zero contribution

    p2 = p_flat.reshape(padded_rows, _LANE)
    t2 = t_flat.reshape(padded_rows, _LANE)

    bph = padded_rows // (2 * block_rows)     # blocks per half / per core

    in_spec = pl.BlockSpec((block_rows, _LANE), lambda core, i: (core * bph + i, 0))
    out_spec = pl.BlockSpec((1, _SUBLANE, _LANE), lambda core, i: (core, 0, 0))
    out_sds = jax.ShapeDtypeStruct((2, _SUBLANE, _LANE), jnp.float32)

    bce_p, inter_p, psum_p, tsum_p = pl.pallas_call(
        _dice_bce_kernel,
        out_shape=(out_sds, out_sds, out_sds, out_sds),
        grid_spec=pltpu.PrefetchScalarGridSpec(
            num_scalar_prefetch=0,
            grid=(2, bph),
            in_specs=[in_spec, in_spec],
            out_specs=(out_spec, out_spec, out_spec, out_spec),
        ),
        compiler_params=pltpu.CompilerParams(
            dimension_semantics=("parallel", "arbitrary")),
    )(p2, t2)

    # Tiny final cross-lane reduce + scalar combine in plain JAX.
    bce_sum = jnp.sum(bce_p)
    intersection = jnp.sum(inter_p)
    p_sum = jnp.sum(psum_p)
    t_sum = jnp.sum(tsum_p)

    smooth = 1e-05
    bce = bce_sum / total
    dice = 1.0 - (2.0 * intersection + smooth) / (p_sum + t_sum + smooth)
    return bce * bce_weight + dice * (1.0 - bce_weight)


def _reference(prediction, target, bce_weight=0.5):
    """Pure-JAX reference mirroring the PyTorch forward."""
    t = jax.nn.one_hot(target, 2, dtype=jnp.float32)
    t = jnp.transpose(t, (0, 3, 1, 2))
    p = prediction.astype(jnp.float32)
    log_p = jnp.maximum(jnp.log(p), -100.0)
    log_1p = jnp.maximum(jnp.log(1.0 - p), -100.0)
    bce = jnp.mean(-(t * log_p + (1.0 - t) * log_1p))
    smooth = 1e-05
    inter = jnp.sum(p * t)
    dice = 1.0 - (2.0 * inter + smooth) / (jnp.sum(p) + jnp.sum(t) + smooth)
    return bce * bce_weight + dice * (1.0 - bce_weight)


if __name__ == "__main__":
    key = jax.random.PRNGKey(0)
    k1, k2 = jax.random.split(key)
    N, C, H, W = 2, 2, 16, 16
    # prediction: probabilities in (0, 1)
    prediction = jax.nn.sigmoid(jax.random.normal(k1, (N, C, H, W), jnp.float32))
    # target: integer labels {0, 1}
    target = jax.random.randint(k2, (N, H, W), 0, 2, dtype=jnp.int32)

    loss = dice_bce_loss(prediction, target, bce_weight=0.5)
    loss = jax.block_until_ready(loss)

    ref = _reference(prediction, target, bce_weight=0.5)
    assert jnp.allclose(loss, ref, atol=1e-5, rtol=1e-5), (loss, ref)
    print("KERNEL_OK")
</pallas_src>

<mosaic_0001>
module attributes {stable_mosaic.version = 11 : i64} {
  func.func @_dice_bce_kernel(%arg0: i32, %arg1: i32, %arg2: memref<8x128xf32, #tpu.memory_space<vmem>>, %arg3: memref<8x128xi8, #tpu.memory_space<vmem>>, %arg4: memref<1x8x128xf32, #tpu.memory_space<vmem>>, %arg5: memref<1x8x128xf32, #tpu.memory_space<vmem>>, %arg6: memref<1x8x128xf32, #tpu.memory_space<vmem>>, %arg7: memref<1x8x128xf32, #tpu.memory_space<vmem>>) attributes {dimension_semantics = [#tpu.dimension_semantics<parallel>, #tpu.dimension_semantics<arbitrary>], iteration_bounds = array<i64: 2, 1>, scalar_prefetch = 0 : i64, scratch_operands = 0 : i64, tpu.core_type = #tpu.core_type<tc>, window_params = [{transform_indices = @transform_0, window_bounds = array<i64: 8, 128>}, {transform_indices = @transform_1, window_bounds = array<i64: 8, 128>}, {transform_indices = @transform_2, window_bounds = array<i64: 1, 8, 128>}, {transform_indices = @transform_3, window_bounds = array<i64: 1, 8, 128>}, {transform_indices = @transform_4, window_bounds = array<i64: 1, 8, 128>}, {transform_indices = @transform_5, window_bounds = array<i64: 1, 8, 128>}]} {
    %c0_i32 = arith.constant 0 : i32
    %0 = arith.cmpi eq, %arg1, %c0_i32 : i32
    %1 = arith.extui %0 : i1 to i32
    %c0_i32_0 = arith.constant 0 : i32
    %2 = arith.cmpi ne, %1, %c0_i32_0 : i32
    scf.if %2 {
      %cst_35 = arith.constant 0.000000e+00 : f32
      %41 = vector.broadcast %cst_35 : f32 to vector<1x8x128xf32>
      %c0_36 = arith.constant 0 : index
      %c0_37 = arith.constant 0 : index
      %c0_38 = arith.constant 0 : index
      %42 = vector.load %arg4[%c0_36, %c0_37, %c0_38] : memref<1x8x128xf32, #tpu.memory_space<vmem>>, vector<1x8x128xf32>
      tpu.vector_store %arg4[%c0_36, %c0_37, %c0_38], %41 {strides = array<i32>} : memref<1x8x128xf32, #tpu.memory_space<vmem>>, vector<1x8x128xf32>,
      %cst_39 = arith.constant 0.000000e+00 : f32
      %43 = vector.broadcast %cst_39 : f32 to vector<1x8x128xf32>
      %c0_40 = arith.constant 0 : index
      %c0_41 = arith.constant 0 : index
      %c0_42 = arith.constant 0 : index
      %44 = vector.load %arg5[%c0_40, %c0_41, %c0_42] : memref<1x8x128xf32, #tpu.memory_space<vmem>>, vector<1x8x128xf32>
      tpu.vector_store %arg5[%c0_40, %c0_41, %c0_42], %43 {strides = array<i32>} : memref<1x8x128xf32, #tpu.memory_space<vmem>>, vector<1x8x128xf32>,
      %cst_43 = arith.constant 0.000000e+00 : f32
      %45 = vector.broadcast %cst_43 : f32 to vector<1x8x128xf32>
      %c0_44 = arith.constant 0 : index
      %c0_45 = arith.constant 0 : index
      %c0_46 = arith.constant 0 : index
      %46 = vector.load %arg6[%c0_44, %c0_45, %c0_46] : memref<1x8x128xf32, #tpu.memory_space<vmem>>, vector<1x8x128xf32>
      tpu.vector_store %arg6[%c0_44, %c0_45, %c0_46], %45 {strides = array<i32>} : memref<1x8x128xf32, #tpu.memory_space<vmem>>, vector<1x8x128xf32>,
      %cst_47 = arith.constant 0.000000e+00 : f32
      %47 = vector.broadcast %cst_47 : f32 to vector<1x8x128xf32>
      %c0_48 = arith.constant 0 : index
      %c0_49 = arith.constant 0 : index
      %c0_50 = arith.constant 0 : index
      %48 = vector.load %arg7[%c0_48, %c0_49, %c0_50] : memref<1x8x128xf32, #tpu.memory_space<vmem>>, vector<1x8x128xf32>
      tpu.vector_store %arg7[%c0_48, %c0_49, %c0_50], %47 {strides = array<i32>} : memref<1x8x128xf32, #tpu.memory_space<vmem>>, vector<1x8x128xf32>,
    } else {
    }
    %c0 = arith.constant 0 : index
    %c0_1 = arith.constant 0 : index
    %3 = vector.load %arg2[%c0, %c0_1] : memref<8x128xf32, #tpu.memory_space<vmem>>, vector<8x128xf32>
    %c0_2 = arith.constant 0 : index
    %c0_3 = arith.constant 0 : index
    %4 = vector.load %arg3[%c0_2, %c0_3] : memref<8x128xi8, #tpu.memory_space<vmem>>, vector<8x128xi8>
    %5 = arith.sitofp %4 : vector<8x128xi8> to vector<8x128xf32>
    %cst = arith.constant 5.000000e-01 : f32
    %6 = vector.broadcast %cst : f32 to vector<8x128xf32>
    %7 = arith.cmpf ogt, %5, %6 : vector<8x128xf32>
    %cst_4 = arith.constant 1.000000e+00 : f32
    %8 = vector.broadcast %cst_4 : f32 to vector<8x128xf32>
    %9 = arith.subf %8, %3 : vector<8x128xf32>
    %10 = arith.select %7, %3, %9 : vector<8x128xi1>, vector<8x128xf32>
    %11 = math.log %10 : vector<8x128xf32>
    %cst_5 = arith.constant -1.000000e+02 : f32
    %12 = vector.broadcast %cst_5 : f32 to vector<8x128xf32>
    %13 = arith.maximumf %11, %12 : vector<8x128xf32>
    %cst_6 = arith.constant 0.000000e+00 : f32
    %14 = vector.broadcast %cst_6 : f32 to vector<8x128xf32>
    %15 = arith.subf %14, %13 : vector<8x128xf32>
    %c0_7 = arith.constant 0 : index
    %c0_8 = arith.constant 0 : index
    %c0_9 = arith.constant 0 : index
    %16 = vector.load %arg4[%c0_7, %c0_8, %c0_9] : memref<1x8x128xf32, #tpu.memory_space<vmem>>, vector<1x8x128xf32>
    %17 = vector.shape_cast %15 : vector<8x128xf32> to vector<1x8x128xf32>
    %cst_10 = arith.constant dense<0.000000e+00> : vector<8x128xf32>
    %18 = vector.multi_reduction <add>, %17, %cst_10 [0] : vector<1x8x128xf32> to vector<8x128xf32>
    %19 = vector.shape_cast %18 : vector<8x128xf32> to vector<1x8x128xf32>
    %20 = arith.addf %16, %19 : vector<1x8x128xf32>
    %c0_11 = arith.constant 0 : index
    %c0_12 = arith.constant 0 : index
    %c0_13 = arith.constant 0 : index
    %21 = vector.load %arg4[%c0_11, %c0_12, %c0_13] : memref<1x8x128xf32, #tpu.memory_space<vmem>>, vector<1x8x128xf32>
    tpu.vector_store %arg4[%c0_11, %c0_12, %c0_13], %20 {strides = array<i32>} : memref<1x8x128xf32, #tpu.memory_space<vmem>>, vector<1x8x128xf32>,
    %c0_14 = arith.constant 0 : index
    %c0_15 = arith.constant 0 : index
    %c0_16 = arith.constant 0 : index
    %22 = vector.load %arg5[%c0_14, %c0_15, %c0_16] : memref<1x8x128xf32, #tpu.memory_space<vmem>>, vector<1x8x128xf32>
    %23 = arith.mulf %3, %5 : vector<8x128xf32>
    %24 = vector.shape_cast %23 : vector<8x128xf32> to vector<1x8x128xf32>
    %cst_17 = arith.constant dense<0.000000e+00> : vector<8x128xf32>
    %25 = vector.multi_reduction <add>, %24, %cst_17 [0] : vector<1x8x128xf32> to vector<8x128xf32>
    %26 = vector.shape_cast %25 : vector<8x128xf32> to vector<1x8x128xf32>
    %27 = arith.addf %22, %26 : vector<1x8x128xf32>
    %c0_18 = arith.constant 0 : index
    %c0_19 = arith.constant 0 : index
    %c0_20 = arith.constant 0 : index
    %28 = vector.load %arg5[%c0_18, %c0_19, %c0_20] : memref<1x8x128xf32, #tpu.memory_space<vmem>>, vector<1x8x128xf32>
    tpu.vector_store %arg5[%c0_18, %c0_19, %c0_20], %27 {strides = array<i32>} : memref<1x8x128xf32, #tpu.memory_space<vmem>>, vector<1x8x128xf32>,
    %c0_21 = arith.constant 0 : index
    %c0_22 = arith.constant 0 : index
    %c0_23 = arith.constant 0 : index
    %29 = vector.load %arg6[%c0_21, %c0_22, %c0_23] : memref<1x8x128xf32, #tpu.memory_space<vmem>>, vector<1x8x128xf32>
    %30 = vector.shape_cast %3 : vector<8x128xf32> to vector<1x8x128xf32>
    %cst_24 = arith.constant dense<0.000000e+00> : vector<8x128xf32>
    %31 = vector.multi_reduction <add>, %30, %cst_24 [0] : vector<1x8x128xf32> to vector<8x128xf32>
    %32 = vector.shape_cast %31 : vector<8x128xf32> to vector<1x8x128xf32>
    %33 = arith.addf %29, %32 : vector<1x8x128xf32>
    %c0_25 = arith.constant 0 : index
    %c0_26 = arith.constant 0 : index
    %c0_27 = arith.constant 0 : index
    %34 = vector.load %arg6[%c0_25, %c0_26, %c0_27] : memref<1x8x128xf32, #tpu.memory_space<vmem>>, vector<1x8x128xf32>
    tpu.vector_store %arg6[%c0_25, %c0_26, %c0_27], %33 {strides = array<i32>} : memref<1x8x128xf32, #tpu.memory_space<vmem>>, vector<1x8x128xf32>,
    %c0_28 = arith.constant 0 : index
    %c0_29 = arith.constant 0 : index
    %c0_30 = arith.constant 0 : index
    %35 = vector.load %arg7[%c0_28, %c0_29, %c0_30] : memref<1x8x128xf32, #tpu.memory_space<vmem>>, vector<1x8x128xf32>
    %36 = vector.shape_cast %5 : vector<8x128xf32> to vector<1x8x128xf32>
    %cst_31 = arith.constant dense<0.000000e+00> : vector<8x128xf32>
    %37 = vector.multi_reduction <add>, %36, %cst_31 [0] : vector<1x8x128xf32> to vector<8x128xf32>
    %38 = vector.shape_cast %37 : vector<8x128xf32> to vector<1x8x128xf32>
    %39 = arith.addf %35, %38 : vector<1x8x128xf32>
    %c0_32 = arith.constant 0 : index
    %c0_33 = arith.constant 0 : index
    %c0_34 = arith.constant 0 : index
    %40 = vector.load %arg7[%c0_32, %c0_33, %c0_34] : memref<1x8x128xf32, #tpu.memory_space<vmem>>, vector<1x8x128xf32>
    tpu.vector_store %arg7[%c0_32, %c0_33, %c0_34], %39 {strides = array<i32>} : memref<1x8x128xf32, #tpu.memory_space<vmem>>, vector<1x8x128xf32>,
    return
  }
  func.func @transform_0(%arg0: i32, %arg1: i32) -> (i32, i32) {
    %c1_i32 = arith.constant 1 : i32
    %0 = arith.muli %arg0, %c1_i32 : i32
    %1 = arith.addi %0, %arg1 : i32
    %c0_i32 = arith.constant 0 : i32
    %c0_i32_0 = arith.constant 0 : i32
    return %1, %c0_i32 : i32, i32
  }
  func.func @transform_1(%arg0: i32, %arg1: i32) -> (i32, i32) {
    %c1_i32 = arith.constant 1 : i32
    %0 = arith.muli %arg0, %c1_i32 : i32
    %1 = arith.addi %0, %arg1 : i32
    %c0_i32 = arith.constant 0 : i32
    %c0_i32_0 = arith.constant 0 : i32
    return %1, %c0_i32 : i32, i32
  }
  func.func @transform_2(%arg0: i32, %arg1: i32) -> (i32, i32, i32) {
    %c0_i32 = arith.constant 0 : i32
    %c0_i32_0 = arith.constant 0 : i32
    %c0_i32_1 = arith.constant 0 : i32
    return %arg0, %c0_i32, %c0_i32_0 : i32, i32, i32
  }
  func.func @transform_3(%arg0: i32, %arg1: i32) -> (i32, i32, i32) {
    %c0_i32 = arith.constant 0 : i32
    %c0_i32_0 = arith.constant 0 : i32
    %c0_i32_1 = arith.constant 0 : i32
    return %arg0, %c0_i32, %c0_i32_0 : i32, i32, i32
  }
  func.func @transform_4(%arg0: i32, %arg1: i32) -> (i32, i32, i32) {
    %c0_i32 = arith.constant 0 : i32
    %c0_i32_0 = arith.constant 0 : i32
    %c0_i32_1 = arith.constant 0 : i32
    return %arg0, %c0_i32, %c0_i32_0 : i32, i32, i32
  }
  func.func @transform_5(%arg0: i32, %arg1: i32) -> (i32, i32, i32) {
    %c0_i32 = arith.constant 0 : i32
    %c0_i32_0 = arith.constant 0 : i32
    %c0_i32_1 = arith.constant 0 : i32
    return %arg0, %c0_i32, %c0_i32_0 : i32, i32, i32
  }
}

</mosaic_0001>

<llo_original>
// kernel: tpu_custom_call.1
$region0: #{tpu_custom_call.1}
  #allocation0 [shape = 'u32[]', space=smem, size = 0x4, offset = 0x4, fixed_abs, tag = 'smem constant byte address 0x4 - core index']
  #allocation1 [shape = 'u32[144,128]{1,0:T(1,128)}', space=vmem, size = 0x12000, scoped, tag = 'internal scratch']
  %s0 = inlined_call_operand.hbm [shape: f32[16,128], index: 0, kind: input, shape index: {}]
  %s1 = inlined_call_operand.hbm [shape: s8[16,128], index: 1, kind: input, shape index: {}]
  %s2 = inlined_call_operand.hbm [shape: f32[2,8,128], index: 2, kind: output, shape index: {0}]
  %s3 = inlined_call_operand.hbm [shape: f32[2,8,128], index: 3, kind: output, shape index: {1}]
  %s4 = inlined_call_operand.hbm [shape: f32[2,8,128], index: 4, kind: output, shape index: {2}]
  %s5 = inlined_call_operand.hbm [shape: f32[2,8,128], index: 5, kind: output, shape index: {3}]
  %6 = xla_tuple %s2, %s3, %s4, %s5
  %s7 = sld [smem:[#allocation0]]
  $region77: #{tpu_custom_call.1} parent=0
    _
  %s9 = ssub.s32 1, %s7
  %s10 = scalar_select 0, %s9, %s7
  $region1: #{tpu_custom_call.1} parent=0
    #allocation2 [shape = 'u8[8192]{0}', space=vmem, size = 0x2000, scoped, tag = 'input window, operand 0']
    #allocation3 [shape = 's32[2]{0}', space=sflag, size = 0x8, scoped, tag = 'scoped memory for tpu_custom_call.1']
    #allocation4 [shape = 's32[2]{0}', space=sflag, size = 0x8, scoped, tag = 'scoped memory for tpu_custom_call.1']
    #allocation5 [shape = 'u8[2048]{0}', space=vmem, size = 0x800, scoped, tag = 'input window, operand 1']
    #allocation6 [shape = 's32[2]{0}', space=sflag, size = 0x8, scoped, tag = 'scoped memory for tpu_custom_call.1']
    #allocation7 [shape = 'u8[8192]{0}', space=vmem, size = 0x2000, scoped, tag = 'output window, operand 0']
    #allocation8 [shape = 'u8[8192]{0}', space=vmem, size = 0x2000, scoped, tag = 'output window, operand 1']
    #allocation9 [shape = 's32[2]{0}', space=sflag, size = 0x8, scoped, tag = 'scoped memory for tpu_custom_call.1']
    #allocation10 [shape = 'u8[8192]{0}', space=vmem, size = 0x2000, scoped, tag = 'output window, operand 2']
    #allocation11 [shape = 'u8[8192]{0}', space=vmem, size = 0x2000, scoped, tag = 'output window, operand 3']
    #allocation12 [shape = 's32[2]{0}', space=sflag, size = 0x8, scoped, tag = 'scoped memory for tpu_custom_call.1']
    %11 = vsyncpa [#allocation3], 0
    %s12 = scalar_lea.sflag [#allocation3], 1
    %13 = vsyncpa %s12, 0
    %14 = vsyncpa [#allocation6], 0
    %s15 = scalar_lea.sflag [#allocation6], 1
    %16 = vsyncpa %s15, 0
    %17 = vsyncpa [#allocation4], 0
    %s18 = scalar_lea.sflag [#allocation4], 1
    %19 = vsyncpa %s18, 0
    %20 = vsyncpa [#allocation9], 0
    %s21 = scalar_lea.sflag [#allocation9], 1
    %22 = vsyncpa %s21, 0
    %23 = vsyncpa [#allocation12], 0
    %s24 = scalar_lea.sflag [#allocation12], 1
    %25 = vsyncpa %s24, 0
    loop: start=0, step=1, limit=4
    $region2: #{tpu_custom_call.1} parent=1 // loop_pre_header
      _
    $region3: #{tpu_custom_call.1} parent=1 // loop_header
      %s27 = sphi 0, %s31
      %p28 = scmp.ge.s32.totalorder %s27, 4
      %s34 = sphi 0, %s46
      %s35 = sphi 0, %s42
      %s36 = sphi 0, %s34
      %s37 = sphi 0, %s35
      %s38 = sphi 0, %s36
      %s39 = sphi 0, %s37
      %s51 = sphi 0, %s53
      %s54 = sphi 0, %s51
      %s55 = sphi 0, %s54
      %s71 = sphi 0, %s55
      %s79 = sphi 0, %s81
      %s82 = sphi 0, %s79
      %s83 = sphi 0, %s82
      %s99 = sphi 0, %s83
      %s105 = sphi 0, %s107
      %s108 = sphi 0, %s105
      %s109 = sphi 0, %s108
      %s125 = sphi 0, %s109
      %s131 = sphi 0, %s133
      %s134 = sphi 0, %s131
      %s135 = sphi 0, %s134
      %s151 = sphi 0, %s135
      %s157 = sphi 0, %s159
      %s160 = sphi 0, %s157
      %s161 = sphi 0, %s160
      %s177 = sphi 0, %s161
      %s183 = sphi 0, %s185
      %s186 = sphi 0, %s183
      %s187 = sphi 0, %s186
      %s203 = sphi 0, %s187
    $region4: #{tpu_custom_call.1} parent=1 // loop_header_branch
      %30 = sbr.rel (%p28) target = $region8
    $region5: #{tpu_custom_call.1} parent=1 // loop_body
      %s32 = ssub.s32 %s27, 1
      %s33 = ssub.s32 %s27, 2
      %s40 = sadd.s32 1, %s35
      %p41 = scmp.ge.s32.totalorder %s40, 1
      %s42 = scalar_select %p41, 0, %s40
      %s43 = sadd.s32 1, %s34
      %s44 = scalar_select %p41, %s43, %s34
      %p45 = scmp.ge.s32.totalorder %s44, 2
      %s46 = scalar_select %p45, 0, %s44
      %s47 = sadd.s32 %s34, %s35
      %s48 = sadd.s32 %s46, %s42
      %s49 = ssub.s32 %s47, %s48
      %p50 = scmp.eq.s32.totalorder %s49, 0
      %s52 = sadd.s32 %s51, 1
      %s53 = scalar_select %p50, %s51, %s52
      %p56 = pneg %p50
      %p57 = scmp.eq.s32.totalorder %s27, 1
      %p58 = por %p56, %p57
      %p59 = scmp.ne.s32.totalorder %s51, %s54
      %p60 = scmp.eq.s32.totalorder %s27, 0
      %p61 = por %p59, %p60
      %p62 = scmp.ne.s32.totalorder %s51, %s54
      %p63 = scmp.eq.s32.totalorder %s32, 1
      %p64 = por %p62, %p63
      %p65 = scmp.ne.s32.totalorder %s54, %s55
      %p66 = scmp.eq.s32.totalorder %s32, 0
      %p67 = por %p65, %p66
      %p68 = scmp.ne.s32.totalorder %s54, %s55
      %p69 = scmp.eq.s32.totalorder %s33, 1
      %p70 = por %p68, %p69
      %p72 = scmp.ne.s32.totalorder %s55, %s71
      %p73 = scmp.eq.s32.totalorder %s33, 0
      %p74 = por %p72, %p73
      %s75 = sadd.s32 %s34, %s35
      %s76 = sadd.s32 %s46, %s42
      %s77 = ssub.s32 %s75, %s76
      %p78 = scmp.eq.s32.totalorder %s77, 0
      %s80 = sadd.s32 %s79, 1
      %s81 = scalar_select %p78, %s79, %s80
      %p84 = pneg %p78
      %p85 = scmp.eq.s32.totalorder %s27, 1
      %p86 = por %p84, %p85
      %p87 = scmp.ne.s32.totalorder %s79, %s82
      %p88 = scmp.eq.s32.totalorder %s27, 0
      %p89 = por %p87, %p88
      %p90 = scmp.ne.s32.totalorder %s79, %s82
      %p91 = scmp.eq.s32.totalorder %s32, 1
      %p92 = por %p90, %p91
      %p93 = scmp.ne.s32.totalorder %s82, %s83
      %p94 = scmp.eq.s32.totalorder %s32, 0
      %p95 = por %p93, %p94
      %p96 = scmp.ne.s32.totalorder %s82, %s83
      %p97 = scmp.eq.s32.totalorder %s33, 1
      %p98 = por %p96, %p97
      %p100 = scmp.ne.s32.totalorder %s83, %s99
      %p101 = scmp.eq.s32.totalorder %s33, 0
      %p102 = por %p100, %p101
      %s103 = ssub.s32 %s34, %s46
      %p104 = scmp.eq.s32.totalorder %s103, 0
      %s106 = sadd.s32 %s105, 1
      %s107 = scalar_select %p104, %s105, %s106
      %p110 = pneg %p104
      %p111 = scmp.eq.s32.totalorder %s27, 1
      %p112 = por %p110, %p111
      %p113 = scmp.ne.s32.totalorder %s105, %s108
      %p114 = scmp.eq.s32.totalorder %s27, 0
      %p115 = por %p113, %p114
      %p116 = scmp.ne.s32.totalorder %s105, %s108
      %p117 = scmp.eq.s32.totalorder %s32, 1
      %p118 = por %p116, %p117
      %p119 = scmp.ne.s32.totalorder %s108, %s109
      %p120 = scmp.eq.s32.totalorder %s32, 0
      %p121 = por %p119, %p120
      %p122 = scmp.ne.s32.totalorder %s108, %s109
      %p123 = scmp.eq.s32.totalorder %s33, 1
      %p124 = por %p122, %p123
      %p126 = scmp.ne.s32.totalorder %s109, %s125
      %p127 = scmp.eq.s32.totalorder %s33, 0
      %p128 = por %p126, %p127
      %s129 = ssub.s32 %s34, %s46
      %p130 = scmp.eq.s32.totalorder %s129, 0
      %s132 = sadd.s32 %s131, 1
      %s133 = scalar_select %p130, %s131, %s132
      %p136 = pneg %p130
      %p137 = scmp.eq.s32.totalorder %s27, 1
      %p138 = por %p136, %p137
      %p139 = scmp.ne.s32.totalorder %s131, %s134
      %p140 = scmp.eq.s32.totalorder %s27, 0
      %p141 = por %p139, %p140
      %p142 = scmp.ne.s32.totalorder %s131, %s134
      %p143 = scmp.eq.s32.totalorder %s32, 1
      %p144 = por %p142, %p143
      %p145 = scmp.ne.s32.totalorder %s134, %s135
      %p146 = scmp.eq.s32.totalorder %s32, 0
      %p147 = por %p145, %p146
      %p148 = scmp.ne.s32.totalorder %s134, %s135
      %p149 = scmp.eq.s32.totalorder %s33, 1
      %p150 = por %p148, %p149
      %p152 = scmp.ne.s32.totalorder %s135, %s151
      %p153 = scmp.eq.s32.totalorder %s33, 0
      %p154 = por %p152, %p153
      %s155 = ssub.s32 %s34, %s46
      %p156 = scmp.eq.s32.totalorder %s155, 0
      %s158 = sadd.s32 %s157, 1
      %s159 = scalar_select %p156, %s157, %s158
      %p162 = pneg %p156
      %p163 = scmp.eq.s32.totalorder %s27, 1
      %p164 = por %p162, %p163
      %p165 = scmp.ne.s32.totalorder %s157, %s160
      %p166 = scmp.eq.s32.totalorder %s27, 0
      %p167 = por %p165, %p166
      %p168 = scmp.ne.s32.totalorder %s157, %s160
      %p169 = scmp.eq.s32.totalorder %s32, 1
      %p170 = por %p168, %p169
      %p171 = scmp.ne.s32.totalorder %s160, %s161
      %p172 = scmp.eq.s32.totalorder %s32, 0
      %p173 = por %p171, %p172
      %p174 = scmp.ne.s32.totalorder %s160, %s161
      %p175 = scmp.eq.s32.totalorder %s33, 1
      %p176 = por %p174, %p175
      %p178 = scmp.ne.s32.totalorder %s161, %s177
      %p179 = scmp.eq.s32.totalorder %s33, 0
      %p180 = por %p178, %p179
      %s181 = ssub.s32 %s34, %s46
      %p182 = scmp.eq.s32.totalorder %s181, 0
      %s184 = sadd.s32 %s183, 1
      %s185 = scalar_select %p182, %s183, %s184
      %p188 = pneg %p182
      %p189 = scmp.eq.s32.totalorder %s27, 1
      %p190 = por %p188, %p189
      %p191 = scmp.ne.s32.totalorder %s183, %s186
      %p192 = scmp.eq.s32.totalorder %s27, 0
      %p193 = por %p191, %p192
      %p194 = scmp.ne.s32.totalorder %s183, %s186
      %p195 = scmp.eq.s32.totalorder %s32, 1
      %p196 = por %p194, %p195
      %p197 = scmp.ne.s32.totalorder %s186, %s187
      %p198 = scmp.eq.s32.totalorder %s32, 0
      %p199 = por %p197, %p198
      %p200 = scmp.ne.s32.totalorder %s186, %s187
      %p201 = scmp.eq.s32.totalorder %s33, 1
      %p202 = por %p200, %p201
      %p204 = scmp.ne.s32.totalorder %s187, %s203
      %p205 = scmp.eq.s32.totalorder %s33, 0
      %p206 = por %p204, %p205
      %p207 = scmp.le.s32.totalorder 1, %s27
      %p208 = scmp.lt.s32.totalorder %s27, 3
      %p209 = pnand %p207, %p208
      %p210 = pneg %p209
      // Predicated region
      $region9: #{tpu_custom_call.1} parent=5 // pred_check
        _
      $region10: #{tpu_custom_call.1} parent=5 // pred_check_branch
        %212 = sbr.rel (%p209) target = $region12
      $region11: #{tpu_custom_call.1} parent=5 // pred_region
        %s213 = ssub.s32 %s27, 1
      $region12: #{tpu_custom_call.1} parent=5 // pred_fallthru
        _
      %p214 = scmp.lt.s32.totalorder %s27, 2
      // Predicated region
      $region13: #{tpu_custom_call.1} parent=5 // pred_check
        %p215 = pneg %p214
      $region14: #{tpu_custom_call.1} parent=5 // pred_check_branch
        %217 = sbr.rel (%p215) target = $region16
      $region15: #{tpu_custom_call.1} parent=5 // pred_region
        // Predicated region
        $region17: #{tpu_custom_call.1} parent=15 // pred_check
          %p218 = pneg %p61
        $region18: #{tpu_custom_call.1} parent=15 // pred_check_branch
          %220 = sbr.rel (%p218) target = $region20
        $region19: #{tpu_custom_call.1} parent=15 // pred_region
          %s221 = sand.u32 %s51, 1
          %s222 = scalar_lea.sflag [#allocation3], %s221
          %s223 = sand.u32 %s51, 1
          %s224 = smul.addr %s223, 8
          %s225 = scalar_lea.vmem [#allocation2], %s224
          %s226 = sadd.s32 %s34, %s35
          %s228 = ssub.s32 128, 128
          %229 = vsyncadd %s222, %s228
          %s230 = smul.addr %s226, 128
          %s231 = scalar_lea.hbm %s0, %s230
          %s233 = sshll.u32 %s225, 4
          %s234 = int_to_ptr.vmem [resolvable:$true] %s233
          %236 = dma.hbm_to_vmem [thread:$0]  %s231, 128, %s234, %s222
        $region20: #{tpu_custom_call.1} parent=15 // pred_fallthru
          _
        // Predicated region
        $region21: #{tpu_custom_call.1} parent=15 // pred_check
          %p237 = pneg %p89
        $region22: #{tpu_custom_call.1} parent=15 // pred_check_branch
          %239 = sbr.rel (%p237) target = $region24
        $region23: #{tpu_custom_call.1} parent=15 // pred_region
          %s240 = sand.u32 %s79, 1
          %s241 = scalar_lea.sflag [#allocation6], %s240
          %s242 = sand.u32 %s79, 1
          %s243 = smul.addr %s242, 2
          %s244 = scalar_lea.vmem [#allocation5], %s243
          %s245 = sadd.s32 %s34, %s35
          %s247 = ssub.s32 32, 32
          %248 = vsyncadd %s241, %s247
          %s249 = smul.addr %s245, 32
          %s250 = scalar_lea.hbm %s1, %s249
          %s252 = sshll.u32 %s244, 4
          %s253 = int_to_ptr.vmem [resolvable:$true] %s252
          %255 = dma.hbm_to_vmem [thread:$0]  %s250, 32, %s253, %s241
        $region24: #{tpu_custom_call.1} parent=15 // pred_fallthru
          _
      $region16: #{tpu_custom_call.1} parent=5 // pred_fallthru
        _
      %p256 = scmp.le.s32.totalorder 1, %s27
      %p257 = scmp.lt.s32.totalorder %s27, 3
      %p258 = pnand %p256, %p257
      %p259 = pneg %p258
      // Predicated region
      $region25: #{tpu_custom_call.1} parent=5 // pred_check
        _
      $region26: #{tpu_custom_call.1} parent=5 // pred_check_branch
        %261 = sbr.rel (%p258) target = $region28
      $region27: #{tpu_custom_call.1} parent=5 // pred_region
        %s262 = ssub.s32 %s27, 1
        %s263 = sand.u32 %s54, 1
        %s264 = scalar_lea.sflag [#allocation3], %s263
        %s265 = sand.u32 %s54, 1
        %s266 = smul.addr %s265, 8
        %s267 = scalar_lea.vmem [#allocation2], %s266
        // Predicated region
        $region29: #{tpu_custom_call.1} parent=27 // pred_check
          %p268 = pneg %p67
        $region30: #{tpu_custom_call.1} parent=27 // pred_check_branch
          %270 = sbr.rel (%p268) target = $region32
        $region31: #{tpu_custom_call.1} parent=27 // pred_region
          %271 = dma.done %s264, 128
        $region32: #{tpu_custom_call.1} parent=27 // pred_fallthru
          _
        %s272 = sand.u32 %s82, 1
        %s273 = scalar_lea.sflag [#allocation6], %s272
        %s274 = sand.u32 %s82, 1
        %s275 = smul.addr %s274, 2
        %s276 = scalar_lea.vmem [#allocation5], %s275
        // Predicated region
        $region33: #{tpu_custom_call.1} parent=27 // pred_check
          %p277 = pneg %p95
        $region34: #{tpu_custom_call.1} parent=27 // pred_check_branch
          %279 = sbr.rel (%p277) target = $region36
        $region35: #{tpu_custom_call.1} parent=27 // pred_region
          %280 = dma.done %s273, 32
        $region36: #{tpu_custom_call.1} parent=27 // pred_fallthru
          _
        %s281 = sand.u32 %s54, 1
        %s282 = scalar_lea.sflag [#allocation3], %s281
        %s283 = sand.u32 %s54, 1
        %s284 = smul.addr %s283, 8
        %s285 = scalar_lea.vmem [#allocation2], %s284
        %p286 = pneg %p67
        %p287 = pneg %p64
        %s288 = sand.u32 %s82, 1
        %s289 = scalar_lea.sflag [#allocation6], %s288
        %s290 = sand.u32 %s82, 1
        %s291 = smul.addr %s290, 2
        %s292 = scalar_lea.vmem [#allocation5], %s291
        %p293 = pneg %p95
        %p294 = pneg %p92
        %p295 = pneg %p121
        %p296 = pneg %p118
        %s297 = sand.u32 %s108, 1
        %s298 = scalar_lea.sflag [#allocation4], %s297
        %s299 = sand.u32 %s108, 1
        %s300 = smul.addr %s299, 8
        %s301 = scalar_lea.vmem [#allocation7], %s300
        %p302 = pneg %p147
        %p303 = pneg %p144
        %s304 = sand.u32 %s32, 1
        %s305 = scalar_lea.sflag [#allocation9], %s304
        %s306 = sand.u32 %s134, 1
        %s307 = smul.addr %s306, 8
        %s308 = scalar_lea.vmem [#allocation8], %s307
        %p309 = pneg %p173
        %p310 = pneg %p170
        %s311 = sand.u32 %s32, 1
        %s312 = scalar_lea.sflag [#allocation9], %s311
        %s313 = sand.u32 %s160, 1
        %s314 = smul.addr %s313, 8
        %s315 = scalar_lea.vmem [#allocation10], %s314
        %p316 = pneg %p199
        %p317 = pneg %p196
        %s318 = sand.u32 %s186, 1
        %s319 = scalar_lea.sflag [#allocation12], %s318
        %s320 = sand.u32 %s186, 1
        %s321 = smul.addr %s320, 8
        %s322 = scalar_lea.vmem [#allocation11], %s321
        %s323 = sadd.s32 %s36, %s37
        %s324 = sadd.s32 %s36, %s37
        %p325 = scmp.eq.s32.totalorder %s37, 0
        // Predicated region
        $region37: #{tpu_custom_call.1} parent=27 // pred_check
          %p326 = pneg %p325
        $region38: #{tpu_custom_call.1} parent=27 // pred_check_branch
          %328 = sbr.rel (%p326) target = $region40
        $region39: #{tpu_custom_call.1} parent=27 // pred_region
          %329 = vst [vmem:[%s301] sm:$0xff] 0.0
          %330 = vst [vmem:[%s308] sm:$0xff] 0.0
          %331 = vst [vmem:[%s315] sm:$0xff] 0.0
          %332 = vst [vmem:[%s322] sm:$0xff] 0.0
        $region40: #{tpu_custom_call.1} parent=27 // pred_fallthru
          _
        %v333 = vld [vmem:[%s267] sm:$0xff]
        %v334 = vld [vmem:[%s276] sm:$0x3]
        %v335 = vunpack.c.0.s8 %v334
        %v336 = vcvt.s32.f32 %v335
        %vm337 = vcmp.gt.f32.partialorder %v336, 0.5
        %v338 = vsub.f32 1.0, %v333
        %v339 = vsel %vm337, %v333, %v338
        %v340 = vlog2.pop %v339
        %v341 = vmul.f32 %v340, 0.6931472
        %v342 = vmax.f32 %v341, -100.0
        %v343 = vsub.f32 0.0, %v342
        %v344 = vld [vmem:[%s301] sm:$0xff]
        %v345 = vadd.f32 %v343, 0.0
        %v346 = vadd.f32 %v344, %v345
        %347 = vst [vmem:[%s301] sm:$0xff] %v346
        %v348 = vld [vmem:[%s308] sm:$0xff]
        %v349 = vmul.f32 %v333, %v336
        %v350 = vadd.f32 %v349, 0.0
        %v351 = vadd.f32 %v348, %v350
        %352 = vst [vmem:[%s308] sm:$0xff] %v351
        %v353 = vld [vmem:[%s315] sm:$0xff]
        %v354 = vadd.f32 %v333, 0.0
        %v355 = vadd.f32 %v353, %v354
        %356 = vst [vmem:[%s315] sm:$0xff] %v355
        %v357 = vld [vmem:[%s322] sm:$0xff]
        %v358 = vadd.f32 %v336, 0.0
        %v359 = vadd.f32 %v357, %v358
        %360 = vst [vmem:[%s322] sm:$0xff] %v359
        %s361 = sand.u32 %s108, 1
        %s362 = scalar_lea.sflag [#allocation4], %s361
        %s363 = sand.u32 %s108, 1
        %s364 = smul.addr %s363, 8
        %s365 = scalar_lea.vmem [#allocation7], %s364
        %s366 = sand.u32 %s32, 1
        %s367 = scalar_lea.sflag [#allocation9], %s366
        %s368 = sand.u32 %s134, 1
        %s369 = smul.addr %s368, 8
        %s370 = scalar_lea.vmem [#allocation8], %s369
        %s371 = sand.u32 %s32, 1
        %s372 = scalar_lea.sflag [#allocation9], %s371
        %s373 = sand.u32 %s160, 1
        %s374 = smul.addr %s373, 8
        %s375 = scalar_lea.vmem [#allocation10], %s374
        %s376 = sand.u32 %s186, 1
        %s377 = scalar_lea.sflag [#allocation12], %s376
        %s378 = sand.u32 %s186, 1
        %s379 = smul.addr %s378, 8
        %s380 = scalar_lea.vmem [#allocation11], %s379
        // Predicated region
        $region41: #{tpu_custom_call.1} parent=27 // pred_check
          %p381 = pneg %p118
        $region42: #{tpu_custom_call.1} parent=27 // pred_check_branch
          %383 = sbr.rel (%p381) target = $region44
        $region43: #{tpu_custom_call.1} parent=27 // pred_region
          %s385 = ssub.s32 128, 128
          %386 = vsyncadd %s362, %s385
          %s387 = smul.addr %s36, 128
          %s388 = scalar_lea.hbm %s2, %s387
          %s390 = sshll.u32 %s365, 4
          %s391 = int_to_ptr.vmem [resolvable:$true] %s390
          %393 = dma.vmem_to_hbm [thread:$0]  %s391, 128, %s388, %s362
        $region44: #{tpu_custom_call.1} parent=27 // pred_fallthru
          _
        // Predicated region
        $region45: #{tpu_custom_call.1} parent=27 // pred_check
          %p394 = pneg %p144
        $region46: #{tpu_custom_call.1} parent=27 // pred_check_branch
          %396 = sbr.rel (%p394) target = $region48
        $region47: #{tpu_custom_call.1} parent=27 // pred_region
          %s398 = ssub.s32 128, 128
          %399 = vsyncadd %s367, %s398
          %s400 = smul.addr %s36, 128
          %s401 = scalar_lea.hbm %s3, %s400
          %s403 = sshll.u32 %s370, 4
          %s404 = int_to_ptr.vmem [resolvable:$true] %s403
          %406 = dma.vmem_to_hbm [thread:$0]  %s404, 128, %s401, %s367
        $region48: #{tpu_custom_call.1} parent=27 // pred_fallthru
          _
        // Predicated region
        $region49: #{tpu_custom_call.1} parent=27 // pred_check
          %p407 = pneg %p170
        $region50: #{tpu_custom_call.1} parent=27 // pred_check_branch
          %409 = sbr.rel (%p407) target = $region52
        $region51: #{tpu_custom_call.1} parent=27 // pred_region
          %s411 = ssub.s32 128, 128
          %412 = vsyncadd %s372, %s411
          %s413 = smul.addr %s36, 128
          %s414 = scalar_lea.hbm %s4, %s413
          %s416 = sshll.u32 %s375, 4
          %s417 = int_to_ptr.vmem [resolvable:$true] %s416
          %419 = dma.vmem_to_hbm [thread:$0]  %s417, 128, %s414, %s372
        $region52: #{tpu_custom_call.1} parent=27 // pred_fallthru
          _
        // Predicated region
        $region53: #{tpu_custom_call.1} parent=27 // pred_check
          %p420 = pneg %p196
        $region54: #{tpu_custom_call.1} parent=27 // pred_check_branch
          %422 = sbr.rel (%p420) target = $region56
        $region55: #{tpu_custom_call.1} parent=27 // pred_region
          %s424 = ssub.s32 128, 128
          %425 = vsyncadd %s377, %s424
          %s426 = smul.addr %s36, 128
          %s427 = scalar_lea.hbm %s5, %s426
          %s429 = sshll.u32 %s380, 4
          %s430 = int_to_ptr.vmem [resolvable:$true] %s429
          %432 = dma.vmem_to_hbm [thread:$0]  %s430, 128, %s427, %s377
        $region56: #{tpu_custom_call.1} parent=27 // pred_fallthru
          _
      $region28: #{tpu_custom_call.1} parent=5 // pred_fallthru
        _
      %p433 = scmp.le.s32.totalorder 2, %s27
      // Predicated region
      $region57: #{tpu_custom_call.1} parent=5 // pred_check
        %p434 = pneg %p433
      $region58: #{tpu_custom_call.1} parent=5 // pred_check_branch
        %436 = sbr.rel (%p434) target = $region60
      $region59: #{tpu_custom_call.1} parent=5 // pred_region
        %s437 = ssub.s32 %s27, 2
        // Predicated region
        $region61: #{tpu_custom_call.1} parent=59 // pred_check
          %p438 = pneg %p124
        $region62: #{tpu_custom_call.1} parent=59 // pred_check_branch
          %440 = sbr.rel (%p438) target = $region64
        $region63: #{tpu_custom_call.1} parent=59 // pred_region
          %s441 = sand.u32 %s109, 1
          %s442 = scalar_lea.sflag [#allocation4], %s441
          %s443 = sand.u32 %s109, 1
          %s444 = smul.addr %s443, 8
          %s445 = scalar_lea.vmem [#allocation7], %s444
          %446 = dma.done %s442, 128
        $region64: #{tpu_custom_call.1} parent=59 // pred_fallthru
          _
        // Predicated region
        $region65: #{tpu_custom_call.1} parent=59 // pred_check
          %p447 = pneg %p150
        $region66: #{tpu_custom_call.1} parent=59 // pred_check_branch
          %449 = sbr.rel (%p447) target = $region68
        $region67: #{tpu_custom_call.1} parent=59 // pred_region
          %s450 = sand.u32 %s33, 1
          %s451 = scalar_lea.sflag [#allocation9], %s450
          %s452 = sand.u32 %s135, 1
          %s453 = smul.addr %s452, 8
          %s454 = scalar_lea.vmem [#allocation8], %s453
          %455 = dma.done %s451, 128
        $region68: #{tpu_custom_call.1} parent=59 // pred_fallthru
          _
        // Predicated region
        $region69: #{tpu_custom_call.1} parent=59 // pred_check
          %p456 = pneg %p176
        $region70: #{tpu_custom_call.1} parent=59 // pred_check_branch
          %458 = sbr.rel (%p456) target = $region72
        $region71: #{tpu_custom_call.1} parent=59 // pred_region
          %s459 = sand.u32 %s33, 1
          %s460 = scalar_lea.sflag [#allocation9], %s459
          %s461 = sand.u32 %s161, 1
          %s462 = smul.addr %s461, 8
          %s463 = scalar_lea.vmem [#allocation10], %s462
          %464 = dma.done %s460, 128
        $region72: #{tpu_custom_call.1} parent=59 // pred_fallthru
          _
        // Predicated region
        $region73: #{tpu_custom_call.1} parent=59 // pred_check
          %p465 = pneg %p202
        $region74: #{tpu_custom_call.1} parent=59 // pred_check_branch
          %467 = sbr.rel (%p465) target = $region76
        $region75: #{tpu_custom_call.1} parent=59 // pred_region
          %s468 = sand.u32 %s187, 1
          %s469 = scalar_lea.sflag [#allocation12], %s468
          %s470 = sand.u32 %s187, 1
          %s471 = smul.addr %s470, 8
          %s472 = scalar_lea.vmem [#allocation11], %s471
          %473 = dma.done %s469, 128
        $region76: #{tpu_custom_call.1} parent=59 // pred_fallthru
          _
      $region60: #{tpu_custom_call.1} parent=5 // pred_fallthru
        _
    $region6: #{tpu_custom_call.1} parent=1 // loop_footer
      %s31 = sadd.s32 1, %s27
    $region7: #{tpu_custom_call.1} parent=1 // loop_footer_branch
      %26 = sbr.rel target = $region3
    $region8: #{tpu_custom_call.1} parent=1 // loop_exit
      _
    %474 = vsyncpa [#allocation3], 1
    %s475 = scalar_lea.sflag [#allocation3], 1
    %476 = vsyncpa %s475, 1
    %477 = vsyncpa [#allocation6], 1
    %s478 = scalar_lea.sflag [#allocation6], 1
    %479 = vsyncpa %s478, 1
    %480 = vsyncpa [#allocation4], 1
    %s481 = scalar_lea.sflag [#allocation4], 1
    %482 = vsyncpa %s481, 1
    %483 = vsyncpa [#allocation9], 1
    %s484 = scalar_lea.sflag [#allocation9], 1
    %485 = vsyncpa %s484, 1
    %486 = vsyncpa [#allocation12], 1
    %s487 = scalar_lea.sflag [#allocation12], 1
    %488 = vsyncpa %s487, 1

</llo_original>
